<compile_context>
chip_gen: v7x
topology: tpu7x:2x2x1
jax: 0.10.0
libtpu: 0.0.40
codegen_flags: <defaults>
</compile_context>

<pallas_src>
import functools

import jax
import jax.numpy as jnp
from jax.experimental import pallas as pl
from jax.experimental.pallas import tpu as pltpu


def _round_up(x, m):
    return (x + m - 1) // m * m


def _fused_attention_kernel(ehb_ref, enc_ref, we_ref, v_ref, o_ref, acc_ref,
                            *, valid_len, tile_s, n_src_tiles):
    # ehb_ref: (tile_b, Dd)          f32   hoisted  h @ Wh^T + b
    # enc_ref: (tile_b, tile_s, De)  bf16  encoder rows (true, unpadded De)
    # we_ref:  (De, Dd)              bf16  We^T (encoder half of concat weight)
    # v_ref:   (1, Dd)               f32   v weight row
    # o_ref:   (tile_b, s_out)       f32   normalized attention (written once)
    # acc_ref: (tile_b, s_out)       f32   VMEM scratch, unnormalized scores
    st = pl.program_id(1)
    tb, ts, d_enc = enc_ref.shape
    d_dec = we_ref.shape[1]

    # One MXU matmul with M = tile_b * tile_s (bf16 operands, f32 accumulate).
    # tile_s is always a multiple of 16, so merging the leading dims of the
    # bf16 block is a clean (packed-tile-aligned) relabel.
    enc = enc_ref[...].reshape(tb * ts, d_enc)
    ee = jnp.dot(enc, we_ref[...], preferred_element_type=jnp.float32)
    energy = jnp.tanh(ee.reshape(tb, ts, d_dec) + ehb_ref[...][:, None, :])

    # v-projection: VPU multiply + lane (XLU) reduce instead of an N=1 MXU
    # matmul; the single sublane->lane relayout of the (tb, ts) result is
    # amortized over the whole 8-row tile.
    scores = jnp.sum(energy * v_ref[...], axis=-1)                  # (tb, ts) f32

    if n_src_tiles == 1:
        acc_ref[...] = scores
    else:
        off = pl.multiple_of(st * tile_s, tile_s)                   # 128-aligned
        acc_ref[:, pl.ds(off, tile_s)] = scores

    # Fused masked softmax: once per batch tile, on the last src tile.
    @pl.when(st == pl.num_programs(1) - 1)
    def _():
        s = acc_ref[...]                                            # (tb, s_out)
        lane = jax.lax.broadcasted_iota(jnp.int32, s.shape, 1)
        s = jnp.where(lane < valid_len, s, -jnp.inf)                # mask ragged S tail
        m = jnp.max(s, axis=-1, keepdims=True)
        e = jnp.exp(s - m)
        denom = jnp.sum(e, axis=-1, keepdims=True)
        # Exact normalization (negligible cost here; avoids the ~1e-3
        # approximate-reciprocal drift flagged in review).
        o_ref[...] = (e / denom).astype(o_ref.dtype)


def _vmem_bytes_estimate(tile_b, tile_s, d_enc, d_dec, s_out):
    lane = lambda n: _round_up(max(n, 1), 128)
    enc_blk = tile_b * _round_up(tile_s, 16) * lane(d_enc) * 2      # bf16
    ehb_blk = _round_up(tile_b, 8) * lane(d_dec) * 4
    we_blk = _round_up(d_enc, 16) * lane(d_dec) * 2
    v_blk = 8 * lane(d_dec) * 4
    out_blk = _round_up(tile_b, 8) * lane(s_out) * 4
    scratch = _round_up(tile_b, 8) * lane(s_out) * 4
    # double-buffered in/out blocks + scratch, 2x headroom for Mosaic internals
    return 2 * (2 * (enc_blk + ehb_blk + we_blk + v_blk + out_blk) + scratch)


def attention_forward(hidden_state, encoder_outputs, w_attn, b_attn, w_v,
                      *, row_tile=512):
    """Pallas equivalent of Attention.forward.

    hidden_state:    (1, B, D)   PyTorch convention (1, batch, dim)
    encoder_outputs: (B, S, D)
    w_attn:          (Dd, 2D)    nn.Linear(enc+dec, dec).weight
    b_attn:          (Dd,)       nn.Linear bias
    w_v:             (1, Dd)     nn.Linear(dec, 1, bias=False).weight
    returns:         (B, S) softmax attention over src_len

    Note: the module's .view(batch, 1, feat_dim) implicitly requires
    enc_hid_dim == dec_hid_dim; the algebraic weight split assumes the
    cat order (hidden, encoder), matching the reference module.
    """
    B, S, D = encoder_outputs.shape
    d_dec = w_attn.shape[0]

    h = hidden_state.reshape(B, D).astype(jnp.float32)

    # Split the concat Linear; hoist the hidden half (tiny XLA matmul).
    wh_t = jnp.transpose(w_attn[:, :D]).astype(jnp.float32)         # (D, Dd)
    we_t = jnp.transpose(w_attn[:, D:])                             # (D, Dd)
    ehb = h @ wh_t + b_attn.astype(jnp.float32)[None, :]            # (B, Dd)

    # bf16 operands for the dominant HBM read and the MXU matmul (f32 accum).
    # In a real pipeline the encoder already emits bf16, making this cast free.
    enc_bf16 = encoder_outputs.astype(jnp.bfloat16)
    we_bf16 = we_t.astype(jnp.bfloat16)
    v_f32 = w_v.astype(jnp.float32).reshape(1, d_dec)

    # ---- Tiling ----
    row_tile = max(128, _round_up(row_tile, 128))
    tile_s = min(_round_up(S, 16), row_tile)    # multiple of 16; >1 tile => x128
    n_st = pl.cdiv(S, tile_s)
    s_out = n_st * tile_s                       # lane width of the score rows

    tile_b = 8 if B >= 8 else B                 # 8 rows/step -> aligned stores
    n_bt = pl.cdiv(B, tile_b)
    b_pad = n_bt * tile_b

    ehb_p = jnp.pad(ehb, ((0, b_pad - B), (0, 0)))   # tiny (B, Dd) pad only;
    # encoder_outputs is NOT padded/copied — edge blocks are clamped and the
    # ragged tail is masked in-kernel.

    vmem_limit = int(min(64 * 1024 * 1024,
                         max(16 * 1024 * 1024,
                             _vmem_bytes_estimate(tile_b, tile_s, D, d_dec,
                                                  s_out))))

    kernel = functools.partial(_fused_attention_kernel,
                               valid_len=S, tile_s=tile_s, n_src_tiles=n_st)

    # NOTE: for very large D the resident We^T block could additionally be
    # single-buffered (pipeline_mode=pl.Buffered(1)); at typical D it is tiny.
    attn = pl.pallas_call(
        kernel,
        out_shape=jax.ShapeDtypeStruct((b_pad, s_out), jnp.float32),
        grid_spec=pltpu.PrefetchScalarGridSpec(
            num_scalar_prefetch=0,
            grid=(n_bt, n_st),                          # batch tiles lead (parallel)
            in_specs=[
                pl.BlockSpec((tile_b, d_dec), lambda b, st: (b, 0)),          # ehb
                pl.BlockSpec((tile_b, tile_s, D), lambda b, st: (b, st, 0)),  # enc (true D)
                pl.BlockSpec((D, d_dec), lambda b, st: (0, 0)),               # We^T resident
                pl.BlockSpec((1, d_dec), lambda b, st: (0, 0)),               # v resident
            ],
            out_specs=pl.BlockSpec((tile_b, s_out), lambda b, st: (b, 0)),
            scratch_shapes=[pltpu.VMEM((tile_b, s_out), jnp.float32)],
        ),
        compiler_params=pltpu.CompilerParams(
            dimension_semantics=("parallel", "arbitrary"),
            vmem_limit_bytes=vmem_limit),
    )(ehb_p, enc_bf16, we_bf16, v_f32)

    return attn[:B, :S]


def _reference(hidden_state, encoder_outputs, w_attn, b_attn, w_v):
    """Plain-JAX replica of the PyTorch forward, for verification."""
    B, S, D = encoder_outputs.shape
    h = hidden_state.reshape(B, 1, D)
    h = jnp.broadcast_to(h, (B, S, D))
    cat = jnp.concatenate([h, encoder_outputs], axis=2)          # (B, S, 2D)
    energy = jnp.tanh(cat @ w_attn.T + b_attn)                   # (B, S, Dd)
    attention = (energy @ w_v.T)[..., 0]                         # (B, S)
    return jax.nn.softmax(attention, axis=1)


if __name__ == "__main__":
    # Small shapes consistent with the module: enc_hid_dim == dec_hid_dim == 32.
    batch, src_len, dim = 2, 8, 32

    key = jax.random.PRNGKey(0)
    k0, k1, k2, k3, k4 = jax.random.split(key, 5)

    hidden_state = jax.random.normal(k0, (1, batch, dim), dtype=jnp.float32)
    encoder_outputs = jax.random.normal(k1, (batch, src_len, dim),
                                        dtype=jnp.float32)

    # Deterministic parameter init (nn.Linear-style uniform bounds).
    bound_attn = 1.0 / jnp.sqrt(2.0 * dim)
    w_attn = jax.random.uniform(k2, (dim, 2 * dim), jnp.float32,
                                -bound_attn, bound_attn)
    b_attn = jax.random.uniform(k3, (dim,), jnp.float32,
                                -bound_attn, bound_attn)
    bound_v = 1.0 / jnp.sqrt(float(dim))
    w_v = jax.random.uniform(k4, (1, dim), jnp.float32, -bound_v, bound_v)

    fwd = jax.jit(attention_forward)
    out = jax.block_until_ready(
        fwd(hidden_state, encoder_outputs, w_attn, b_attn, w_v))

    ref = _reference(hidden_state, encoder_outputs, w_attn, b_attn, w_v)
    assert out.shape == (batch, src_len)
    # Tolerance accounts for the bf16 MXU operands (f32 accumulation).
    assert jnp.allclose(out, ref, atol=5e-3, rtol=5e-3), "mismatch vs reference"
    assert jnp.allclose(jnp.sum(out, axis=1), 1.0, atol=1e-3)

    print("KERNEL_OK")
</pallas_src>

<mosaic_0001>
module attributes {stable_mosaic.version = 11 : i64} {
  func.func @_fused_attention_kernel(%arg0: i32, %arg1: i32, %arg2: memref<2x32xf32, #tpu.memory_space<vmem>>, %arg3: memref<2x16x32xbf16, #tpu.memory_space<vmem>>, %arg4: memref<32x32xbf16, #tpu.memory_space<vmem>>, %arg5: memref<1x32xf32, #tpu.memory_space<vmem>>, %arg6: memref<2x16xf32, #tpu.memory_space<vmem>>, %arg7: memref<2x16xf32, #tpu.memory_space<vmem>>) attributes {dimension_semantics = [#tpu.dimension_semantics<parallel>, #tpu.dimension_semantics<arbitrary>], iteration_bounds = array<i64: 1, 1>, scalar_prefetch = 0 : i64, scratch_operands = 1 : i64, tpu.core_type = #tpu.core_type<tc>, window_params = [{transform_indices = @transform_0, window_bounds = array<i64: 2, 32>}, {transform_indices = @transform_1, window_bounds = array<i64: 2, 16, 32>}, {pipeline_mode = #tpu.pipeline_mode<synchronous>, transform_indices = @transform_2, window_bounds = array<i64: 32, 32>}, {pipeline_mode = #tpu.pipeline_mode<synchronous>, transform_indices = @transform_3, window_bounds = array<i64: 1, 32>}, {transform_indices = @transform_4, window_bounds = array<i64: 2, 16>}]} {
    %c0 = arith.constant 0 : index
    %c0_0 = arith.constant 0 : index
    %c0_1 = arith.constant 0 : index
    %0 = vector.load %arg3[%c0, %c0_0, %c0_1] : memref<2x16x32xbf16, #tpu.memory_space<vmem>>, vector<2x16x32xbf16>
    %1 = vector.shape_cast %0 : vector<2x16x32xbf16> to vector<32x32xbf16>
    %c0_2 = arith.constant 0 : index
    %c0_3 = arith.constant 0 : index
    %2 = vector.load %arg4[%c0_2, %c0_3] : memref<32x32xbf16, #tpu.memory_space<vmem>>, vector<32x32xbf16>
    %cst = arith.constant dense<0.000000e+00> : vector<32x32xf32>
    %3 = tpu.matmul %1, %2, %cst {dimension_numbers = #tpu.dot_dimension_numbers<[1], [0], [0], [1], [0, 0, 1, 1], [], []>} : vector<32x32xbf16>, vector<32x32xbf16>, vector<32x32xf32> -> vector<32x32xf32>
    %4 = vector.shape_cast %3 : vector<32x32xf32> to vector<2x16x32xf32>
    %c0_4 = arith.constant 0 : index
    %c0_5 = arith.constant 0 : index
    %5 = vector.load %arg2[%c0_4, %c0_5] : memref<2x32xf32, #tpu.memory_space<vmem>>, vector<2x32xf32>
    %6 = vector.shape_cast %5 : vector<2x32xf32> to vector<2x1x32xf32>
    %7 = vector.broadcast %6 : vector<2x1x32xf32> to vector<2x16x32xf32>
    %8 = arith.addf %4, %7 : vector<2x16x32xf32>
    %9 = math.tanh %8 : vector<2x16x32xf32>
    %c0_6 = arith.constant 0 : index
    %c0_7 = arith.constant 0 : index
    %10 = vector.load %arg5[%c0_6, %c0_7] : memref<1x32xf32, #tpu.memory_space<vmem>>, vector<1x32xf32>
    %11 = vector.shape_cast %10 : vector<1x32xf32> to vector<1x1x32xf32>
    %12 = vector.broadcast %11 : vector<1x1x32xf32> to vector<2x16x32xf32>
    %13 = arith.mulf %9, %12 : vector<2x16x32xf32>
    %cst_8 = arith.constant dense<0.000000e+00> : vector<2x16xf32>
    %14 = vector.multi_reduction <add>, %13, %cst_8 [2] : vector<2x16x32xf32> to vector<2x16xf32>
    %c0_9 = arith.constant 0 : index
    %c0_10 = arith.constant 0 : index
    %15 = vector.load %arg7[%c0_9, %c0_10] : memref<2x16xf32, #tpu.memory_space<vmem>>, vector<2x16xf32>
    tpu.vector_store %arg7[%c0_9, %c0_10], %14 {strides = array<i32>} : memref<2x16xf32, #tpu.memory_space<vmem>>, vector<2x16xf32>,
    %c0_i32 = arith.constant 0 : i32
    %16 = arith.cmpi eq, %arg1, %c0_i32 : i32
    %17 = arith.extui %16 : i1 to i32
    %c0_i32_11 = arith.constant 0 : i32
    %18 = arith.cmpi ne, %17, %c0_i32_11 : i32
    scf.if %18 {
      %c0_12 = arith.constant 0 : index
      %c0_13 = arith.constant 0 : index
      %19 = vector.load %arg7[%c0_12, %c0_13] : memref<2x16xf32, #tpu.memory_space<vmem>>, vector<2x16xf32>
      %20 = tpu.iota {dimensions = array<i32: 1>} : vector<2x16xi32>
      %c8_i32 = arith.constant 8 : i32
      %21 = vector.broadcast %c8_i32 : i32 to vector<2x16xi32>
      %22 = arith.cmpi slt, %20, %21 : vector<2x16xi32>
      %cst_14 = arith.constant 0xFF800000 : f32
      %23 = vector.broadcast %cst_14 : f32 to vector<2x16xf32>
      %24 = arith.select %22, %19, %23 : vector<2x16xi1>, vector<2x16xf32>
      %cst_15 = arith.constant dense<0xFF800000> : vector<2xf32>
      %25 = vector.multi_reduction <maximumf>, %24, %cst_15 [1] : vector<2x16xf32> to vector<2xf32>
      %26 = vector.shape_cast %25 : vector<2xf32> to vector<2x1xf32>
      %27 = vector.broadcast %26 : vector<2x1xf32> to vector<2x16xf32>
      %28 = arith.subf %24, %27 : vector<2x16xf32>
      %29 = math.exp %28 : vector<2x16xf32>
      %cst_16 = arith.constant dense<0.000000e+00> : vector<2xf32>
      %30 = vector.multi_reduction <add>, %29, %cst_16 [1] : vector<2x16xf32> to vector<2xf32>
      %31 = vector.shape_cast %30 : vector<2xf32> to vector<2x1xf32>
      %32 = vector.broadcast %31 : vector<2x1xf32> to vector<2x16xf32>
      %33 = arith.divf %29, %32 : vector<2x16xf32>
      %c0_17 = arith.constant 0 : index
      %c0_18 = arith.constant 0 : index
      %34 = vector.load %arg6[%c0_17, %c0_18] : memref<2x16xf32, #tpu.memory_space<vmem>>, vector<2x16xf32>
      tpu.vector_store %arg6[%c0_17, %c0_18], %33 {strides = array<i32>} : memref<2x16xf32, #tpu.memory_space<vmem>>, vector<2x16xf32>,
    } else {
    }
    return
  }
  func.func @transform_0(%arg0: i32, %arg1: i32) -> (i32, i32) {
    %c0_i32 = arith.constant 0 : i32
    %c0_i32_0 = arith.constant 0 : i32
    return %arg0, %c0_i32 : i32, i32
  }
  func.func @transform_1(%arg0: i32, %arg1: i32) -> (i32, i32, i32) {
    %c0_i32 = arith.constant 0 : i32
    %c0_i32_0 = arith.constant 0 : i32
    return %arg0, %arg1, %c0_i32 : i32, i32, i32
  }
  func.func @transform_2(%arg0: i32, %arg1: i32) -> (i32, i32) {
    %c0_i32 = arith.constant 0 : i32
    %c0_i32_0 = arith.constant 0 : i32
    %c0_i32_1 = arith.constant 0 : i32
    return %c0_i32, %c0_i32_0 : i32, i32
  }
  func.func @transform_3(%arg0: i32, %arg1: i32) -> (i32, i32) {
    %c0_i32 = arith.constant 0 : i32
    %c0_i32_0 = arith.constant 0 : i32
    %c0_i32_1 = arith.constant 0 : i32
    return %c0_i32, %c0_i32_0 : i32, i32
  }
  func.func @transform_4(%arg0: i32, %arg1: i32) -> (i32, i32) {
    %c0_i32 = arith.constant 0 : i32
    %c0_i32_0 = arith.constant 0 : i32
    return %arg0, %c0_i32 : i32, i32
  }
}

</mosaic_0001>

<llo_original>
// kernel: attention_forward.1
$region0: #{attention_forward.1}
  #allocation0 [shape = 'u32[]', space=smem, size = 0x4, offset = 0x4, fixed_abs, tag = 'smem constant byte address 0x4 - core index']
  #allocation1 [shape = 'u32[144,128]{1,0:T(1,128)}', space=vmem, size = 0x12000, scoped, tag = 'internal scratch']
  #allocation2 [shape = 'f32[2,16]{1,0:T(2,128)}', space=vmem, size = 0x400, scoped, tag = 'scratch operand']
  %s0 = inlined_call_operand.vmem [shape: f32[2,32], index: 0, kind: input, shape index: {}]
  %s1 = inlined_call_operand.vmem [shape: bf16[2,8,32], index: 1, kind: input, shape index: {}]
  %s2 = inlined_call_operand.vmem [shape: bf16[32,32], index: 2, kind: input, shape index: {}]
  %s3 = inlined_call_operand.vmem [shape: f32[1,32], index: 3, kind: input, shape index: {}]
  %s4 = inlined_call_operand.hbm [shape: f32[2,16], index: 4, kind: output, shape index: {}]
  %s5 = sld [smem:[#allocation0]]
  $region71: #{attention_forward.1} parent=0
    _
  %s7 = ssub.s32 1, %s5
  %s8 = scalar_select 0, %s7, %s5
  $region1: #{attention_forward.1} parent=0
    #allocation3 [shape = 'u8[8192]{0}', space=vmem, size = 0x2000, scoped, tag = 'input window, operand 1, single buffered']
    #allocation4 [shape = 'u8[1024]{0}', space=vmem, size = 0x400, scoped, tag = 'output window, operand 0, single buffered']
    #allocation5 [shape = 's32[1]{0}', space=sflag, size = 0x4, scoped, tag = 'scoped memory for attention_forward.1']
    %9 = vsyncpa [#allocation5], 0
    // Predicated region
    $region2: #{attention_forward.1} parent=1 // pred_check
      _
    $region3: #{attention_forward.1} parent=1 // pred_check_branch
      %11 = sbr.rel (0) target = $region5
    $region4: #{attention_forward.1} parent=1 // pred_region
      _
    $region5: #{attention_forward.1} parent=1 // pred_fallthru
      _
    // Predicated region
    $region6: #{attention_forward.1} parent=1 // pred_check
      _
    $region7: #{attention_forward.1} parent=1 // pred_check_branch
      %13 = sbr.rel (0) target = $region9
    $region8: #{attention_forward.1} parent=1 // pred_region
      // Predicated region
      $region10: #{attention_forward.1} parent=8 // pred_check
        _
      $region11: #{attention_forward.1} parent=8 // pred_check_branch
        %15 = sbr.rel (0) target = $region13
      $region12: #{attention_forward.1} parent=8 // pred_region
        // Predicated region
        $region14: #{attention_forward.1} parent=12 // pred_check
          _
        $region15: #{attention_forward.1} parent=12 // pred_check_branch
          %17 = sbr.rel target = $region17
        $region16: #{attention_forward.1} parent=12 // pred_region
          // Predicated region
          $region29: #{attention_forward.1} parent=16 // pred_check
            _
          $region30: #{attention_forward.1} parent=16 // pred_check_branch
            %34 = sbr.rel (0) target = $region32
          $region31: #{attention_forward.1} parent=16 // pred_region
            loop: start=0, step=1, limit=1
            $region33: #{attention_forward.1} parent=31 // loop_pre_header
              _
            $region34: #{attention_forward.1} parent=31 // loop_header
              %s36 = sphi 0, %s40
              %p37 = scmp.ge.s32.totalorder %s36, 1
              %s41 = sphi %s1, %s1
              %s42 = sphi [#allocation3], [#allocation3]
            $region35: #{attention_forward.1} parent=31 // loop_header_branch
              %39 = sbr.rel (%p37) target = $region39
            $region36: #{attention_forward.1} parent=31 // loop_body
              _
            $region37: #{attention_forward.1} parent=31 // loop_footer
              %s40 = sadd.s32 1, %s36
            $region38: #{attention_forward.1} parent=31 // loop_footer_branch
              %35 = sbr.rel target = $region34
            $region39: #{attention_forward.1} parent=31 // loop_exit
              _
            loop: start=0, step=1, limit=1
            $region40: #{attention_forward.1} parent=31 // loop_pre_header
              _
            $region41: #{attention_forward.1} parent=31 // loop_header
              %s45 = sphi 0, %s49
              %p46 = scmp.ge.s32.totalorder %s45, 1
              %s50 = sphi %s1, %s1
              %s51 = sphi [#allocation3], [#allocation3]
            $region42: #{attention_forward.1} parent=31 // loop_header_branch
              %48 = sbr.rel (%p46) target = $region46
            $region43: #{attention_forward.1} parent=31 // loop_body
              %v52 = vld [vmem:[%s50] sm:$0xf]
              %53 = vst [vmem:[%s51] sm:$0xf] %v52
              %v54 = vld [vmem:[%s50 + $0x4] sm:$0xf]
              %55 = vst [vmem:[%s51 + $0x8] sm:$0xf] %v54
            $region44: #{attention_forward.1} parent=31 // loop_footer
              %s49 = sadd.s32 1, %s45
            $region45: #{attention_forward.1} parent=31 // loop_footer_branch
              %44 = sbr.rel target = $region41
            $region46: #{attention_forward.1} parent=31 // loop_exit
              _
          $region32: #{attention_forward.1} parent=16 // pred_fallthru
            _
        $region17: #{attention_forward.1} parent=12 // pred_fallthru
          _
        // Predicated region
        $region18: #{attention_forward.1} parent=12 // pred_check
          _
        $region19: #{attention_forward.1} parent=12 // pred_check_branch
          %19 = sbr.rel (0) target = $region21
        $region20: #{attention_forward.1} parent=12 // pred_region
          loop: start=0, step=1, limit=1
          $region22: #{attention_forward.1} parent=20 // loop_pre_header
            _
          $region23: #{attention_forward.1} parent=20 // loop_header
            %s22 = sphi 0, %s26
            %p23 = scmp.ge.s32.totalorder %s22, 1
            %s27 = sphi %s1, %s1
            %s28 = sphi [#allocation3], [#allocation3]
          $region24: #{attention_forward.1} parent=20 // loop_header_branch
            %25 = sbr.rel (%p23) target = $region28
          $region25: #{attention_forward.1} parent=20 // loop_body
            %v29 = vld [vmem:[%s27] sm:$0xf]
            %30 = vst [vmem:[%s28] sm:$0xf] %v29
            %v31 = vld [vmem:[%s27 + $0x4] sm:$0xf]
            %32 = vst [vmem:[%s28 + $0x8] sm:$0xf] %v31
          $region26: #{attention_forward.1} parent=20 // loop_footer
            %s26 = sadd.s32 1, %s22
          $region27: #{attention_forward.1} parent=20 // loop_footer_branch
            %21 = sbr.rel target = $region23
          $region28: #{attention_forward.1} parent=20 // loop_exit
            _
        $region21: #{attention_forward.1} parent=12 // pred_fallthru
          _
      $region13: #{attention_forward.1} parent=8 // pred_fallthru
        _
      %56 = vnop
    $region9: #{attention_forward.1} parent=1 // pred_fallthru
      _
    // Predicated region
    $region47: #{attention_forward.1} parent=1 // pred_check
      _
    $region48: #{attention_forward.1} parent=1 // pred_check_branch
      %58 = sbr.rel (0) target = $region50
    $region49: #{attention_forward.1} parent=1 // pred_region
      _
    $region50: #{attention_forward.1} parent=1 // pred_fallthru
      _
    // Predicated region
    $region51: #{attention_forward.1} parent=1 // pred_check
      _
    $region52: #{attention_forward.1} parent=1 // pred_check_branch
      %60 = sbr.rel (0) target = $region54
    $region53: #{attention_forward.1} parent=1 // pred_region
      _
    $region54: #{attention_forward.1} parent=1 // pred_fallthru
      _
    // Predicated region
    $region55: #{attention_forward.1} parent=1 // pred_check
      _
    $region56: #{attention_forward.1} parent=1 // pred_check_branch
      %62 = sbr.rel (0) target = $region58
    $region57: #{attention_forward.1} parent=1 // pred_region
      _
    $region58: #{attention_forward.1} parent=1 // pred_fallthru
      _
    %v64 = vld [vmem:[#allocation3] sm:$0xf]
    %v65 = vld [vmem:[#allocation3 + $0x4] sm:$0xf]
    %v66 = vld [vmem:[#allocation3 + $0x8] sm:$0xf]
    %v67 = vld [vmem:[#allocation3 + $0xc] sm:$0xf]
    %v68 = vld [vmem:[%s2] sm:$0xf]
    %v69 = vld [vmem:[%s2 + $0x4] sm:$0xf]
    %v70 = vld [vmem:[%s2 + $0x8] sm:$0xf]
    %v71 = vld [vmem:[%s2 + $0xc] sm:$0xf]
    %v76 = vunpack.c.l.b16 %v64
    %v77 = vunpack.c.l.b16 %v65
    %v78 = vunpack.c.l.b16 %v66
    %v79 = vunpack.c.l.b16 %v67
    %v80 = vpack.c.b16 %v77, %v76
    %v81 = vpack.c.b16 %v79, %v78
    %v86 = vunpack.c.l.b16 %v68
    %v87 = vunpack.c.l.b16 %v69
    %v88 = vunpack.c.l.b16 %v70
    %v89 = vunpack.c.l.b16 %v71
    %v90 = vpack.c.b16 %v87, %v86
    %v91 = vpack.c.b16 %v89, %v88
    %vm94 = vcmask 261120
    %v96 = vsel %vm94, %v80, 0
    %v99 = vsel %vm94, %v81, 0
    %101 = vmatprep.subr.bf16.mxu0 0
    %102 = vmatpush1.bf16.msra.mxu0 %v90
    %103 = vmatprep.subr.bf16.mxu0 0
    %104 = vmatpush1.bf16.msra.mxu0 %v91
    %105 = vmatprep.subr.bf16.mxu0 0
    %106 = vmatpush1.bf16.msra.mxu0 0
    %107 = vmatprep.subr.bf16.mxu0 0
    %108 = vmatpush1.bf16.msra.mxu0 0
    %109 = vmatprep.subr.bf16.mxu0 0
    %110 = vmatpush1.bf16.msra.mxu0 0
    %111 = vmatprep.subr.bf16.mxu0 0
    %112 = vmatpush1.bf16.msra.mxu0 0
    %113 = vmatprep.subr.bf16.mxu0 0
    %114 = vmatpush1.bf16.msra.mxu0 0
    %115 = vmatprep.subr.bf16.mxu0 0
    %116 = vmatpush1.bf16.msra.mxu0 0
    %117 = vmatprep.subr.bf16.mxu0 0
    %118 = vmatpush1.bf16.msra.mxu0 0
    %119 = vmatprep.subr.bf16.mxu0 0
    %120 = vmatpush1.bf16.msra.mxu0 0
    %121 = vmatprep.subr.bf16.mxu0 0
    %122 = vmatpush1.bf16.msra.mxu0 0
    %123 = vmatprep.subr.bf16.mxu0 0
    %124 = vmatpush1.bf16.msra.mxu0 0
    %125 = vmatprep.subr.bf16.mxu0 0
    %126 = vmatpush1.bf16.msra.mxu0 0
    %127 = vmatprep.subr.bf16.mxu0 0
    %128 = vmatpush1.bf16.msra.mxu0 0
    %129 = vmatprep.subr.bf16.mxu0 0
    %130 = vmatpush1.bf16.msra.mxu0 0
    %131 = vmatprep.subr.bf16.mxu0 0
    %132 = vmatpush1.bf16.msra.mxu0 0
    %133 = vmatprep.mubr.bf16.mxu0 0
    %134 = vmatmul.mubr.bf16.gmra.mrb[0].mxu0 %v96
    %v135 = vpop.f32.mrb[0].mxu0
    %v136 = vadd.f32 0.0, %v135
    %v137 = vpop.f32.mrb[0].mxu0
    %v138 = vpop.f32.mrb[0].mxu0
    %v139 = vadd.f32 0.0, %v138
    %v140 = vpop.f32.mrb[0].mxu0
    %141 = vmatprep.mubr.bf16.mxu0 0
    %142 = vmatmul.mubr.bf16.gmra.mrb[0].mxu0 %v99
    %v143 = vpop.f32.mrb[0].mxu0
    %v144 = vadd.f32 0.0, %v143
    %v145 = vpop.f32.mrb[0].mxu0
    %v146 = vpop.f32.mrb[0].mxu0
    %v147 = vadd.f32 0.0, %v146
    %v148 = vpop.f32.mrb[0].mxu0
    %149 = vdwg.mxu0
    %v150 = vld [vmem:[%s0] sm:$0x3]
    %v153 = vunpack.c.l.s4 1966171168
    %v154 = vunpack.c.0.s8 %v153
    %v155 = vlaneseq
    %v156 = vshrl.u32 %v155, 7
    %v157 = vsub.s32 %v154, %v156
    %v158 = vrot.slane %v150, %v157
    %v159 = vcombine.high %v158, %v158
    %v161 = vunpack.c.l.s4 1966171168
    %v162 = vunpack.c.0.s8 %v161
    %v163 = vlaneseq
    %v164 = vshrl.u32 %v163, 7
    %v165 = vsub.s32 %v162, %v164
    %v166 = vrot.slane %v158, %v165
    %v168 = vunpack.c.l.s4 1966171168
    %v169 = vunpack.c.0.s8 %v168
    %v170 = vlaneseq
    %v171 = vshrl.u32 %v170, 7
    %v172 = vsub.s32 %v169, %v171
    %v173 = vrot.slane %v159, %v172
    %v174 = vlaneseq
    %v175 = vshrl.u32 %v174, 7
    %v176 = vsub.s32 0, %v175
    %v177 = vrot.slane %v166, %v176
    %v178 = vlaneseq
    %v179 = vshrl.u32 %v178, 7
    %v180 = vsub.s32 0, %v179
    %v181 = vrot.slane %v173, %v180
    %v184 = vadd.f32 %v136, %v177
    %v185 = vadd.f32 %v139, %v177
    %v186 = vadd.f32 %v144, %v181
    %v187 = vadd.f32 %v147, %v181
    %v188 = vtanh.pop %v184
    %v189 = vtanh.pop %v185
    %v190 = vtanh.pop %v186
    %v191 = vtanh.pop %v187
    %v192 = vld [vmem:[%s3] sm:$0x1]
    %v194 = vlaneseq
    %v195 = vshrl.u32 %v194, 7
    %v196 = vsub.s32 0, %v195
    %v197 = vrot.slane %v192, %v196
    %v199 = vmul.f32 %v188, %v197
    %v200 = vmul.f32 %v189, %v197
    %v201 = vmul.f32 %v190, %v197
    %v202 = vmul.f32 %v191, %v197
    %v203 = vsel %vm94, %v199, 0.0
    %204 = vadd.xlane.f32.xlu0 %v203
    %v205 = vpop.xlane.xlu0 %204
    %v206 = vsel %vm94, %v200, 0.0
    %207 = vadd.xlane.f32.xlu0 %v206
    %v208 = vpop.xlane.xlu0 %207
    %v209 = vsel %vm94, %v201, 0.0
    %210 = vadd.xlane.f32.xlu0 %v209
    %v211 = vpop.xlane.xlu0 %210
    %v212 = vsel %vm94, %v202, 0.0
    %213 = vadd.xlane.f32.xlu0 %v212
    %v214 = vpop.xlane.xlu0 %213
    %v219 = vlaneseq
    %v220 = vand.u32 %v219, 127
    %v221 = vlaneseq
    %v222 = vshrl.u32 %v221, 7
    %v223 = vsub.s32 %v220, %v222
    %v224 = vrot.slane %v205, %v223
    %v225 = vadd.s32 %v220, 4294967288
    %v226 = vlaneseq
    %v227 = vshrl.u32 %v226, 7
    %v228 = vsub.s32 %v225, %v227
    %v229 = vrot.slane %v208, %v228
    %vm230 = vcmask 130112
    %v231 = vsel %vm230, %v229, %v224
    %v232 = vlaneseq
    %v233 = vshrl.u32 %v232, 7
    %v234 = vsub.s32 %v220, %v233
    %v235 = vrot.slane %v211, %v234
    %v236 = vlaneseq
    %v237 = vshrl.u32 %v236, 7
    %v238 = vsub.s32 %v225, %v237
    %v239 = vrot.slane %v214, %v238
    %v240 = vsel %vm230, %v239, %v235
    %vm241 = vcmask 1041409
    %v242 = vsel %vm241, %v240, %v231
    %vm244 = vcmask 123904
    %245 = vst.msk [vmem:[#allocation2] sm:$0x3] %vm244, %v242
    %p246 = scmp.eq.s32.totalorder 0, 0
    // Predicated region
    $region59: #{attention_forward.1} parent=1 // pred_check
      %p247 = pneg %p246
    $region60: #{attention_forward.1} parent=1 // pred_check_branch
      %249 = sbr.rel (%p247) target = $region62
    $region61: #{attention_forward.1} parent=1 // pred_region
      %v250 = vld [vmem:[#allocation2] sm:$0x3]
      %vm251 = vcmp.lt.s32.totalorder %v220, 8
      %v252 = vsel %vm251, %v250, -inf
      %v253 = vsel %vm244, %v252, -inf
      %254 = vmax.xlane.f32.xlu0 %v253
      %v255 = vpop.xlane.xlu0 %254
      %v256 = vsub.f32 %v252, %v255
      %v257 = vmul.f32 %v256, 1.442695
      %v258 = vpow.pop %v257
      %v259 = vsel %vm244, %v258, 0.0
      %260 = vadd.xlane.f32.xlu0 %v259
      %v261 = vpop.xlane.xlu0 %260
      %v262 = vrcp.pop %v261
      %v263 = vmul.f32 %v258, %v262
      %264 = vst.msk [vmem:[#allocation4] sm:$0x3] %vm244, %v263
    $region62: #{attention_forward.1} parent=1 // pred_fallthru
      _
    // Predicated region
    $region63: #{attention_forward.1} parent=1 // pred_check
      _
    $region64: #{attention_forward.1} parent=1 // pred_check_branch
      %266 = sbr.rel (0) target = $region66
    $region65: #{attention_forward.1} parent=1 // pred_region
      %s268 = ssub.s32 32, 32
      %269 = vsyncadd [#allocation5], %s268
      %s271 = sshll.u32 [#allocation4], 4
      %s272 = int_to_ptr.vmem [resolvable:$true] %s271
      %274 = dma.vmem_to_hbm [thread:$0]  %s272, 32, %s4, [#allocation5]
    $region66: #{attention_forward.1} parent=1 // pred_fallthru
      _
    // Predicated region
    $region67: #{attention_forward.1} parent=1 // pred_check
      _
    $region68: #{attention_forward.1} parent=1 // pred_check_branch
      %276 = sbr.rel (0) target = $region70
    $region69: #{attention_forward.1} parent=1 // pred_region
      %277 = dma.done [#allocation5], 32
    $region70: #{attention_forward.1} parent=1 // pred_fallthru
      _
    %278 = vsyncpa [#allocation5], 1

</llo_original>
